<compile_context>
chip_gen: v7x
topology: tpu7x:2x2x1
jax: 0.10.0
libtpu: 0.0.40
codegen_flags: <defaults>
</compile_context>

<pallas_src>
import functools

import jax
import jax.numpy as jnp
from jax.experimental import pallas as pl
from jax.experimental.pallas import tpu as pltpu


def _round_up(x, m):
    return (x + m - 1) // m * m


# --------------------------------------------------------------------------
# Fused single-pass kernel: whole (1, C, Lp) slab resident in VMEM.
# --------------------------------------------------------------------------
def _fused_kernel(x_ref, w_ref, b_ref, o_ref, *, denom, eps, valid_l):
    # x_ref/o_ref: (1, C, Lp); w_ref/b_ref: (C, 1)
    x = x_ref[...].astype(jnp.float32)                          # (1, C, Lp)
    mean = jnp.sum(x, axis=(1, 2), keepdims=True) / denom       # (1, 1, 1)
    # Centered variance (matches torch exactly); mask zero-padded lanes so
    # they do not contribute (x - mean)^2.
    lane = jax.lax.broadcasted_iota(jnp.int32, x.shape, 2)
    diff = jnp.where(lane < valid_l, x - mean, 0.0)
    var = jnp.sum(diff * diff, axis=(1, 2), keepdims=True) / denom
    inv_std = jax.lax.rsqrt(var + eps)                          # (1, 1, 1)
    w = w_ref[...].astype(jnp.float32)                          # (C, 1)
    b = b_ref[...].astype(jnp.float32)                          # (C, 1)
    scale = w * inv_std[0]                                      # (C, 1)
    shift = b - scale * mean[0]                                 # (C, 1)
    o_ref[...] = (x * scale[None] + shift[None]).astype(o_ref.dtype)


# --------------------------------------------------------------------------
# Two-pass path (large slabs): pass 1 = streamed stats, pass 2 = normalize.
# --------------------------------------------------------------------------
def _stats_kernel(x_ref, s_ref, acc_ref, *, denom, eps):
    # x_ref:   (1, C, TL) tile of one batch element (L on the lane axis)
    # s_ref:   (1, 2, 128) output: row 0 = mean, row 1 = inv_std (lane bcast)
    # acc_ref: (2, TL) f32 VMEM scratch (row 0 = partial sum, row 1 = sumsq)
    l = pl.program_id(1)

    @pl.when(l == 0)
    def _init():
        acc_ref[...] = jnp.zeros_like(acc_ref)

    x = x_ref[...].astype(jnp.float32)            # (1, C, TL)
    acc_ref[0:1, :] += jnp.sum(x, axis=1)         # (1, TL)
    acc_ref[1:2, :] += jnp.sum(x * x, axis=1)     # (1, TL)

    @pl.when(l == pl.num_programs(1) - 1)
    def _finalize():
        tot = jnp.sum(acc_ref[0:1, :], axis=1, keepdims=True)      # (1, 1)
        tot_sq = jnp.sum(acc_ref[1:2, :], axis=1, keepdims=True)   # (1, 1)
        mean = tot / denom
        # E[x^2] - mean^2 (single HBM read); clamp guards tiny negatives.
        var = jnp.maximum(tot_sq / denom - mean * mean, 0.0)
        inv_std = jax.lax.rsqrt(var + eps)
        s_ref[:, 0:1, :] = jnp.broadcast_to(mean[None], (1, 1, 128))
        s_ref[:, 1:2, :] = jnp.broadcast_to(inv_std[None], (1, 1, 128))


def _norm_kernel(x_ref, s_ref, w_ref, b_ref, o_ref):
    # x_ref: (1, C, TL); s_ref: (1, 2, 128); w_ref/b_ref: (C, 1)
    x = x_ref[...].astype(jnp.float32)            # (1, C, TL)
    s = s_ref[...]                                # (1, 2, 128) f32
    mean = s[0, 0:1, 0:1]                         # (1, 1)
    inv_std = s[0, 1:2, 0:1]                      # (1, 1)
    w = w_ref[...].astype(jnp.float32)            # (C, 1)
    b = b_ref[...].astype(jnp.float32)            # (C, 1)
    scale = w * inv_std                           # (C, 1)  (O(C) per step)
    shift = b - scale * mean                      # (C, 1)
    o_ref[...] = (x * scale[None] + shift[None]).astype(o_ref.dtype)


def _choose_tile(L, C, target_elems):
    """Pick (lane_tile, padded_L).

    lane_tile is a multiple of 128 such that the f32 (C, tile) slab is at most
    ~target_elems elements.  Prefers exact divisors of L (no padding copy);
    only pads when that would force tiny tiles, and bounds the padding."""
    max_tl = max(128, (target_elems // max(C, 1)) // 128 * 128)
    L128 = _round_up(L, 128)
    if L128 <= max_tl:
        return L128, L128                      # one tile covers the whole row
    if L % 128 == 0:
        best = max(t for t in range(128, max_tl + 1, 128) if L % t == 0)
        if best >= min(2048, max_tl // 2):
            return best, L                     # good tile, zero extra traffic
    # Accept a bounded zero-pad (one extra copy of x) to unlock a large tile.
    for t in range(max_tl, 127, -128):
        pad = _round_up(L, t) - L
        if pad <= max(1024, L // 16):
            return t, L + pad
    return 128, L128


def global_layer_norm(x, weight=None, bias=None, eps=1e-8, *,
                      fused_max_elems=512 * 1024,      # f32 slab <= ~2 MiB
                      tile_target_elems=512 * 1024,    # f32 tile <= ~2 MiB
                      vmem_limit_bytes=32 * 1024 * 1024):
    """Pallas GlobalLayerNorm (same semantics as the PyTorch module).

    x:      (N, C, H, W) or (N, C, L)
    weight: (C, 1, 1) / (C, 1) or None   bias: same or None
    The budget keyword args are conservative defaults valid on v5e/v6e/v7x;
    they can be raised per-generation (e.g. via pltpu.get_tpu_info()).
    """
    orig_shape = x.shape
    if x.ndim == 4:
        N, C, H, W = x.shape
        L = H * W
    elif x.ndim == 3:
        N, C, L = x.shape
    else:
        raise ValueError("GlobalLayerNorm expects 3-D or 4-D input")

    x3 = x.reshape(N, C, L)                          # contiguous, no transpose
    w = (jnp.ones((C, 1), jnp.float32) if weight is None
         else weight.reshape(C, 1).astype(jnp.float32))
    b = (jnp.zeros((C, 1), jnp.float32) if bias is None
         else bias.reshape(C, 1).astype(jnp.float32))
    denom = float(C * L)
    eps = float(eps)

    L128 = _round_up(L, 128)

    if C * L128 <= fused_max_elems:
        # ---------------- fused single-pass path ----------------
        Lp = L128
        x3p = jnp.pad(x3, ((0, 0), (0, 0), (0, Lp - L))) if Lp != L else x3
        out = pl.pallas_call(
            functools.partial(_fused_kernel, denom=denom, eps=eps, valid_l=L),
            out_shape=jax.ShapeDtypeStruct((N, C, Lp), x.dtype),
            grid_spec=pltpu.PrefetchScalarGridSpec(
                num_scalar_prefetch=0,
                grid=(N,),
                in_specs=[
                    pl.BlockSpec((1, C, Lp), lambda n: (n, 0, 0)),
                    pl.BlockSpec((C, 1), lambda n: (0, 0)),
                    pl.BlockSpec((C, 1), lambda n: (0, 0)),
                ],
                out_specs=pl.BlockSpec((1, C, Lp), lambda n: (n, 0, 0)),
            ),
            compiler_params=pltpu.CompilerParams(
                dimension_semantics=("parallel",),
                vmem_limit_bytes=vmem_limit_bytes),
        )(x3p, w, b)
    else:
        # ---------------- two-pass streamed path ----------------
        tl, Lp = _choose_tile(L, C, tile_target_elems)
        x3p = jnp.pad(x3, ((0, 0), (0, 0), (0, Lp - L))) if Lp != L else x3
        n_l = Lp // tl

        # Pass 1: per-batch global statistics (mean, inv_std).
        stats = pl.pallas_call(
            functools.partial(_stats_kernel, denom=denom, eps=eps),
            out_shape=jax.ShapeDtypeStruct((N, 2, 128), jnp.float32),
            grid_spec=pltpu.PrefetchScalarGridSpec(
                num_scalar_prefetch=0,
                grid=(N, n_l),
                in_specs=[pl.BlockSpec((1, C, tl), lambda n, l: (n, 0, l))],
                out_specs=pl.BlockSpec((1, 2, 128), lambda n, l: (n, 0, 0)),
                scratch_shapes=[pltpu.VMEM((2, tl), jnp.float32)],
            ),
            compiler_params=pltpu.CompilerParams(
                dimension_semantics=("parallel", "arbitrary"),
                vmem_limit_bytes=vmem_limit_bytes),
        )(x3p)

        # Pass 2: lane-dense normalize + affine (one FMA per element).
        out = pl.pallas_call(
            _norm_kernel,
            out_shape=jax.ShapeDtypeStruct((N, C, Lp), x.dtype),
            grid_spec=pltpu.PrefetchScalarGridSpec(
                num_scalar_prefetch=0,
                grid=(N, n_l),
                in_specs=[
                    pl.BlockSpec((1, C, tl), lambda n, l: (n, 0, l)),
                    pl.BlockSpec((1, 2, 128), lambda n, l: (n, 0, 0)),
                    pl.BlockSpec((C, 1), lambda n, l: (0, 0)),
                    pl.BlockSpec((C, 1), lambda n, l: (0, 0)),
                ],
                out_specs=pl.BlockSpec((1, C, tl), lambda n, l: (n, 0, l)),
            ),
            compiler_params=pltpu.CompilerParams(
                dimension_semantics=("parallel", "parallel"),
                vmem_limit_bytes=vmem_limit_bytes),
        )(x3p, stats, w, b)

    if Lp != L:
        out = out[:, :, :L]
    return out.reshape(orig_shape)


# --------------------------------------------------------------------------
# Pure-JAX reference (mirrors the PyTorch forward).
# --------------------------------------------------------------------------
def _reference(x, weight, bias, eps=1e-8):
    if x.ndim == 4:
        axes = (1, 2, 3)
        w = weight.reshape(1, -1, 1, 1)
        b = bias.reshape(1, -1, 1, 1)
    else:
        axes = (1, 2)
        w = weight.reshape(1, -1, 1)
        b = bias.reshape(1, -1, 1)
    mean = jnp.mean(x, axes, keepdims=True)
    var = jnp.mean((x - mean) ** 2, axes, keepdims=True)
    return w * (x - mean) / jnp.sqrt(var + eps) + b


if __name__ == "__main__":
    key = jax.random.PRNGKey(0)
    k4, k3, kb = jax.random.split(key, 3)

    # 4-D (N, C, H, W), (C,1,1) params (torch init for shape == 4)
    # -> fused single-pass path.
    N, C, H, W = 2, 4, 16, 16
    x4 = jax.random.normal(k4, (N, C, H, W), dtype=jnp.float32)
    w4 = jnp.ones((C, 1, 1), jnp.float32)
    b4 = jnp.zeros((C, 1, 1), jnp.float32)
    out4 = jax.block_until_ready(global_layer_norm(x4, w4, b4, eps=1e-8))
    ref4 = _reference(x4, w4, b4, eps=1e-8)
    assert out4.shape == x4.shape
    assert jnp.allclose(out4, ref4, atol=1e-5, rtol=1e-5)

    # 3-D (N, C, L) with L not a multiple of 128 (torch init for shape == 3)
    # -> fused path with zero-padding.
    N3, C3, L3 = 2, 4, 200
    x3 = jax.random.normal(k3, (N3, C3, L3), dtype=jnp.float32)
    w3 = jnp.ones((C3, 1), jnp.float32)
    b3 = jnp.zeros((C3, 1), jnp.float32)
    out3 = jax.block_until_ready(global_layer_norm(x3, w3, b3, eps=1e-8))
    ref3 = _reference(x3, w3, b3, eps=1e-8)
    assert out3.shape == x3.shape
    assert jnp.allclose(out3, ref3, atol=1e-5, rtol=1e-5)

    # Larger slab (still modest, ~8 MiB) that exercises the tiled two-pass path.
    Nb, Cb, Lb = 2, 8, 128 * 1024
    xb = jax.random.normal(kb, (Nb, Cb, Lb), dtype=jnp.float32)
    wb = jnp.ones((Cb, 1), jnp.float32)
    bb = jnp.zeros((Cb, 1), jnp.float32)
    outb = jax.block_until_ready(global_layer_norm(xb, wb, bb, eps=1e-8))
    refb = _reference(xb, wb, bb, eps=1e-8)
    assert outb.shape == xb.shape
    assert jnp.allclose(outb, refb, atol=2e-4, rtol=2e-4)

    print("KERNEL_OK")
</pallas_src>

<mosaic_0001>
module attributes {stable_mosaic.version = 11 : i64} {
  func.func @_fused_kernel(%arg0: i32, %arg1: memref<1x4x256xf32, #tpu.memory_space<vmem>>, %arg2: memref<4x1xf32, #tpu.memory_space<vmem>>, %arg3: memref<4x1xf32, #tpu.memory_space<vmem>>, %arg4: memref<1x4x256xf32, #tpu.memory_space<vmem>>) attributes {dimension_semantics = [#tpu.dimension_semantics<parallel>], iteration_bounds = array<i64: 2>, scalar_prefetch = 0 : i64, scratch_operands = 0 : i64, tpu.core_type = #tpu.core_type<tc>, window_params = [{transform_indices = @transform_0, window_bounds = array<i64: 1, 4, 256>}, {pipeline_mode = #tpu.pipeline_mode<synchronous>, transform_indices = @transform_1, window_bounds = array<i64: 4, 1>}, {pipeline_mode = #tpu.pipeline_mode<synchronous>, transform_indices = @transform_2, window_bounds = array<i64: 4, 1>}, {transform_indices = @transform_3, window_bounds = array<i64: 1, 4, 256>}]} {
    %c0 = arith.constant 0 : index
    %c0_0 = arith.constant 0 : index
    %c0_1 = arith.constant 0 : index
    %0 = vector.load %arg1[%c0, %c0_0, %c0_1] : memref<1x4x256xf32, #tpu.memory_space<vmem>>, vector<1x4x256xf32>
    %cst = arith.constant dense<0.000000e+00> : vector<1xf32>
    %1 = vector.multi_reduction <add>, %0, %cst [1, 2] : vector<1x4x256xf32> to vector<1xf32>
    %2 = vector.shape_cast %1 : vector<1xf32> to vector<1x1x1xf32>
    %cst_2 = arith.constant 1.024000e+03 : f32
    %3 = vector.broadcast %cst_2 : f32 to vector<1x1x1xf32>
    %4 = arith.divf %2, %3 : vector<1x1x1xf32>
    %5 = tpu.iota {dimensions = array<i32: 2>} : vector<1x4x256xi32>
    %c256_i32 = arith.constant 256 : i32
    %6 = vector.broadcast %c256_i32 : i32 to vector<1x4x256xi32>
    %7 = arith.cmpi slt, %5, %6 : vector<1x4x256xi32>
    %8 = vector.broadcast %4 : vector<1x1x1xf32> to vector<1x4x256xf32>
    %9 = arith.subf %0, %8 : vector<1x4x256xf32>
    %cst_3 = arith.constant 0.000000e+00 : f32
    %10 = vector.broadcast %cst_3 : f32 to vector<1x4x256xf32>
    %11 = arith.select %7, %9, %10 : vector<1x4x256xi1>, vector<1x4x256xf32>
    %12 = arith.mulf %11, %11 : vector<1x4x256xf32>
    %cst_4 = arith.constant dense<0.000000e+00> : vector<1xf32>
    %13 = vector.multi_reduction <add>, %12, %cst_4 [1, 2] : vector<1x4x256xf32> to vector<1xf32>
    %14 = vector.shape_cast %13 : vector<1xf32> to vector<1x1x1xf32>
    %cst_5 = arith.constant 1.024000e+03 : f32
    %15 = vector.broadcast %cst_5 : f32 to vector<1x1x1xf32>
    %16 = arith.divf %14, %15 : vector<1x1x1xf32>
    %cst_6 = arith.constant 9.99999993E-9 : f32
    %17 = vector.broadcast %cst_6 : f32 to vector<1x1x1xf32>
    %18 = arith.addf %16, %17 : vector<1x1x1xf32>
    %19 = math.rsqrt %18 : vector<1x1x1xf32>
    %c0_7 = arith.constant 0 : index
    %c0_8 = arith.constant 0 : index
    %20 = vector.load %arg2[%c0_7, %c0_8] : memref<4x1xf32, #tpu.memory_space<vmem>>, vector<4x1xf32>
    %c0_9 = arith.constant 0 : index
    %c0_10 = arith.constant 0 : index
    %21 = vector.load %arg3[%c0_9, %c0_10] : memref<4x1xf32, #tpu.memory_space<vmem>>, vector<4x1xf32>
    %22 = vector.shape_cast %19 : vector<1x1x1xf32> to vector<1x1xf32>
    %23 = vector.broadcast %22 : vector<1x1xf32> to vector<4x1xf32>
    %24 = arith.mulf %20, %23 : vector<4x1xf32>
    %25 = vector.shape_cast %4 : vector<1x1x1xf32> to vector<1x1xf32>
    %26 = vector.broadcast %25 : vector<1x1xf32> to vector<4x1xf32>
    %27 = arith.mulf %24, %26 : vector<4x1xf32>
    %28 = arith.subf %21, %27 : vector<4x1xf32>
    %29 = vector.shape_cast %24 : vector<4x1xf32> to vector<1x4x1xf32>
    %30 = vector.broadcast %29 : vector<1x4x1xf32> to vector<1x4x256xf32>
    %31 = arith.mulf %0, %30 : vector<1x4x256xf32>
    %32 = vector.shape_cast %28 : vector<4x1xf32> to vector<1x4x1xf32>
    %33 = vector.broadcast %32 : vector<1x4x1xf32> to vector<1x4x256xf32>
    %34 = arith.addf %31, %33 : vector<1x4x256xf32>
    %c0_11 = arith.constant 0 : index
    %c0_12 = arith.constant 0 : index
    %c0_13 = arith.constant 0 : index
    %35 = vector.load %arg4[%c0_11, %c0_12, %c0_13] : memref<1x4x256xf32, #tpu.memory_space<vmem>>, vector<1x4x256xf32>
    tpu.vector_store %arg4[%c0_11, %c0_12, %c0_13], %34 {strides = array<i32>} : memref<1x4x256xf32, #tpu.memory_space<vmem>>, vector<1x4x256xf32>,
    return
  }
  func.func @transform_0(%arg0: i32) -> (i32, i32, i32) {
    %c0_i32 = arith.constant 0 : i32
    %c0_i32_0 = arith.constant 0 : i32
    %c0_i32_1 = arith.constant 0 : i32
    return %arg0, %c0_i32, %c0_i32_0 : i32, i32, i32
  }
  func.func @transform_1(%arg0: i32) -> (i32, i32) {
    %c0_i32 = arith.constant 0 : i32
    %c0_i32_0 = arith.constant 0 : i32
    %c0_i32_1 = arith.constant 0 : i32
    return %c0_i32, %c0_i32_0 : i32, i32
  }
  func.func @transform_2(%arg0: i32) -> (i32, i32) {
    %c0_i32 = arith.constant 0 : i32
    %c0_i32_0 = arith.constant 0 : i32
    %c0_i32_1 = arith.constant 0 : i32
    return %c0_i32, %c0_i32_0 : i32, i32
  }
  func.func @transform_3(%arg0: i32) -> (i32, i32, i32) {
    %c0_i32 = arith.constant 0 : i32
    %c0_i32_0 = arith.constant 0 : i32
    %c0_i32_1 = arith.constant 0 : i32
    return %arg0, %c0_i32, %c0_i32_0 : i32, i32, i32
  }
}

</mosaic_0001>

<llo_original>
// kernel: tpu_custom_call.1
$region0: #{tpu_custom_call.1}
  #allocation0 [shape = 'u32[]', space=smem, size = 0x4, offset = 0x4, fixed_abs, tag = 'smem constant byte address 0x4 - core index']
  #allocation1 [shape = 'u32[144,128]{1,0:T(1,128)}', space=vmem, size = 0x12000, scoped, tag = 'internal scratch']
  %s0 = inlined_call_operand.hbm [shape: f32[2,4,256], index: 0, kind: input, shape index: {}]
  %s1 = inlined_call_operand.vmem [shape: f32[4,1], index: 1, kind: input, shape index: {}]
  %s2 = inlined_call_operand.vmem [shape: f32[4,1], index: 2, kind: input, shape index: {}]
  %s3 = inlined_call_operand.hbm [shape: f32[2,4,256], index: 3, kind: output, shape index: {}]
  %s4 = sld [smem:[#allocation0]]
  $region49: #{tpu_custom_call.1} parent=0
    _
  %s6 = ssub.s32 1, %s4
  %s7 = scalar_select 0, %s6, %s4
  $region1: #{tpu_custom_call.1} parent=0
    #allocation2 [shape = 'u8[8192]{0}', space=vmem, size = 0x2000, scoped, tag = 'input window, operand 0']
    #allocation3 [shape = 's32[2]{0}', space=sflag, size = 0x8, scoped, tag = 'scoped memory for tpu_custom_call.1']
    #allocation4 [shape = 's32[2]{0}', space=sflag, size = 0x8, scoped, tag = 'scoped memory for tpu_custom_call.1']
    #allocation5 [shape = 'u8[8192]{0}', space=vmem, size = 0x2000, scoped, tag = 'output window, operand 0']
    %8 = vsyncpa [#allocation3], 0
    %s9 = scalar_lea.sflag [#allocation3], 1
    %10 = vsyncpa %s9, 0
    %11 = vsyncpa [#allocation4], 0
    %s12 = scalar_lea.sflag [#allocation4], 1
    %13 = vsyncpa %s12, 0
    loop: start=0, step=1, limit=4
    $region2: #{tpu_custom_call.1} parent=1 // loop_pre_header
      _
    $region3: #{tpu_custom_call.1} parent=1 // loop_header
      %s15 = sphi 0, %s19
      %p16 = scmp.ge.s32.totalorder %s15, 4
      %s25 = sphi 0, %s27
      %s28 = sphi 0, %s25
      %s29 = sphi 0, %s28
      %s45 = sphi 0, %s29
      %s49 = sphi 0, %s49
      %s51 = sphi 0, %s49
      %s52 = sphi 0, %s51
      %s66 = sphi 0, %s52
      %s70 = sphi 0, %s70
      %s72 = sphi 0, %s70
      %s73 = sphi 0, %s72
      %s87 = sphi 0, %s73
      %s93 = sphi 0, %s95
      %s96 = sphi 0, %s93
      %s97 = sphi 0, %s96
      %s113 = sphi 0, %s97
    $region4: #{tpu_custom_call.1} parent=1 // loop_header_branch
      %18 = sbr.rel (%p16) target = $region8
    $region5: #{tpu_custom_call.1} parent=1 // loop_body
      %s20 = ssub.s32 %s15, 1
      %s21 = ssub.s32 %s15, 2
      %s22 = sadd.s32 %s15, 1
      %s23 = ssub.s32 %s15, %s22
      %p24 = scmp.eq.s32.totalorder %s23, 0
      %s26 = sadd.s32 %s25, 1
      %s27 = scalar_select %p24, %s25, %s26
      %p30 = pneg %p24
      %p31 = scmp.eq.s32.totalorder %s15, 1
      %p32 = por %p30, %p31
      %p33 = scmp.ne.s32.totalorder %s25, %s28
      %p34 = scmp.eq.s32.totalorder %s15, 0
      %p35 = por %p33, %p34
      %p36 = scmp.ne.s32.totalorder %s25, %s28
      %p37 = scmp.eq.s32.totalorder %s20, 1
      %p38 = por %p36, %p37
      %p39 = scmp.ne.s32.totalorder %s28, %s29
      %p40 = scmp.eq.s32.totalorder %s20, 0
      %p41 = por %p39, %p40
      %p42 = scmp.ne.s32.totalorder %s28, %s29
      %p43 = scmp.eq.s32.totalorder %s21, 1
      %p44 = por %p42, %p43
      %p46 = scmp.ne.s32.totalorder %s29, %s45
      %p47 = scmp.eq.s32.totalorder %s21, 0
      %p48 = por %p46, %p47
      %s50 = sadd.s32 %s49, 1
      %p53 = scmp.eq.s32.totalorder %s15, 1
      %p54 = scmp.ne.s32.totalorder %s49, %s51
      %p55 = scmp.eq.s32.totalorder %s15, 0
      %p56 = por %p54, %p55
      %p57 = scmp.ne.s32.totalorder %s49, %s51
      %p58 = scmp.eq.s32.totalorder %s20, 1
      %p59 = por %p57, %p58
      %p60 = scmp.ne.s32.totalorder %s51, %s52
      %p61 = scmp.eq.s32.totalorder %s20, 0
      %p62 = por %p60, %p61
      %p63 = scmp.ne.s32.totalorder %s51, %s52
      %p64 = scmp.eq.s32.totalorder %s21, 1
      %p65 = por %p63, %p64
      %p67 = scmp.ne.s32.totalorder %s52, %s66
      %p68 = scmp.eq.s32.totalorder %s21, 0
      %p69 = por %p67, %p68
      %s71 = sadd.s32 %s70, 1
      %p74 = scmp.eq.s32.totalorder %s15, 1
      %p75 = scmp.ne.s32.totalorder %s70, %s72
      %p76 = scmp.eq.s32.totalorder %s15, 0
      %p77 = por %p75, %p76
      %p78 = scmp.ne.s32.totalorder %s70, %s72
      %p79 = scmp.eq.s32.totalorder %s20, 1
      %p80 = por %p78, %p79
      %p81 = scmp.ne.s32.totalorder %s72, %s73
      %p82 = scmp.eq.s32.totalorder %s20, 0
      %p83 = por %p81, %p82
      %p84 = scmp.ne.s32.totalorder %s72, %s73
      %p85 = scmp.eq.s32.totalorder %s21, 1
      %p86 = por %p84, %p85
      %p88 = scmp.ne.s32.totalorder %s73, %s87
      %p89 = scmp.eq.s32.totalorder %s21, 0
      %p90 = por %p88, %p89
      %s91 = ssub.s32 %s15, %s22
      %p92 = scmp.eq.s32.totalorder %s91, 0
      %s94 = sadd.s32 %s93, 1
      %s95 = scalar_select %p92, %s93, %s94
      %p98 = pneg %p92
      %p99 = scmp.eq.s32.totalorder %s15, 1
      %p100 = por %p98, %p99
      %p101 = scmp.ne.s32.totalorder %s93, %s96
      %p102 = scmp.eq.s32.totalorder %s15, 0
      %p103 = por %p101, %p102
      %p104 = scmp.ne.s32.totalorder %s93, %s96
      %p105 = scmp.eq.s32.totalorder %s20, 1
      %p106 = por %p104, %p105
      %p107 = scmp.ne.s32.totalorder %s96, %s97
      %p108 = scmp.eq.s32.totalorder %s20, 0
      %p109 = por %p107, %p108
      %p110 = scmp.ne.s32.totalorder %s96, %s97
      %p111 = scmp.eq.s32.totalorder %s21, 1
      %p112 = por %p110, %p111
      %p114 = scmp.ne.s32.totalorder %s97, %s113
      %p115 = scmp.eq.s32.totalorder %s21, 0
      %p116 = por %p114, %p115
      %p117 = scmp.le.s32.totalorder 1, %s15
      %p118 = scmp.lt.s32.totalorder %s15, 3
      %p119 = pnand %p117, %p118
      %p120 = pneg %p119
      // Predicated region
      $region9: #{tpu_custom_call.1} parent=5 // pred_check
        _
      $region10: #{tpu_custom_call.1} parent=5 // pred_check_branch
        %122 = sbr.rel (%p119) target = $region12
      $region11: #{tpu_custom_call.1} parent=5 // pred_region
        %s123 = ssub.s32 %s15, 1
        // Predicated region
        $region13: #{tpu_custom_call.1} parent=11 // pred_check
          %p124 = pneg %p62
        $region14: #{tpu_custom_call.1} parent=11 // pred_check_branch
          %126 = sbr.rel (%p124) target = $region16
        $region15: #{tpu_custom_call.1} parent=11 // pred_region
          _
        $region16: #{tpu_custom_call.1} parent=11 // pred_fallthru
          _
        // Predicated region
        $region17: #{tpu_custom_call.1} parent=11 // pred_check
          %p127 = pneg %p83
        $region18: #{tpu_custom_call.1} parent=11 // pred_check_branch
          %129 = sbr.rel (%p127) target = $region20
        $region19: #{tpu_custom_call.1} parent=11 // pred_region
          _
        $region20: #{tpu_custom_call.1} parent=11 // pred_fallthru
          _
      $region12: #{tpu_custom_call.1} parent=5 // pred_fallthru
        _
      %p130 = scmp.lt.s32.totalorder %s15, 2
      // Predicated region
      $region21: #{tpu_custom_call.1} parent=5 // pred_check
        %p131 = pneg %p130
      $region22: #{tpu_custom_call.1} parent=5 // pred_check_branch
        %133 = sbr.rel (%p131) target = $region24
      $region23: #{tpu_custom_call.1} parent=5 // pred_region
        // Predicated region
        $region25: #{tpu_custom_call.1} parent=23 // pred_check
          %p134 = pneg %p35
        $region26: #{tpu_custom_call.1} parent=23 // pred_check_branch
          %136 = sbr.rel (%p134) target = $region28
        $region27: #{tpu_custom_call.1} parent=23 // pred_region
          %s137 = sand.u32 %s25, 1
          %s138 = scalar_lea.sflag [#allocation3], %s137
          %s139 = sand.u32 %s25, 1
          %s140 = smul.addr %s139, 8
          %s141 = scalar_lea.vmem [#allocation2], %s140
          %s143 = ssub.s32 128, 128
          %144 = vsyncadd %s138, %s143
          %s145 = smul.addr %s15, 2
          %s146 = smul.addr %s145, 64
          %s147 = scalar_lea.hbm %s0, %s146
          %s149 = sshll.u32 %s141, 4
          %s150 = int_to_ptr.vmem [resolvable:$true] %s149
          %152 = dma.hbm_to_vmem [thread:$0]  %s147, 128, %s150, %s138
        $region28: #{tpu_custom_call.1} parent=23 // pred_fallthru
          _
      $region24: #{tpu_custom_call.1} parent=5 // pred_fallthru
        _
      %p153 = scmp.le.s32.totalorder 1, %s15
      %p154 = scmp.lt.s32.totalorder %s15, 3
      %p155 = pnand %p153, %p154
      %p156 = pneg %p155
      // Predicated region
      $region29: #{tpu_custom_call.1} parent=5 // pred_check
        _
      $region30: #{tpu_custom_call.1} parent=5 // pred_check_branch
        %158 = sbr.rel (%p155) target = $region32
      $region31: #{tpu_custom_call.1} parent=5 // pred_region
        %s159 = ssub.s32 %s15, 1
        %s160 = sand.u32 %s28, 1
        %s161 = scalar_lea.sflag [#allocation3], %s160
        %s162 = sand.u32 %s28, 1
        %s163 = smul.addr %s162, 8
        %s164 = scalar_lea.vmem [#allocation2], %s163
        // Predicated region
        $region33: #{tpu_custom_call.1} parent=31 // pred_check
          %p165 = pneg %p41
        $region34: #{tpu_custom_call.1} parent=31 // pred_check_branch
          %167 = sbr.rel (%p165) target = $region36
        $region35: #{tpu_custom_call.1} parent=31 // pred_region
          %168 = dma.done %s161, 128
        $region36: #{tpu_custom_call.1} parent=31 // pred_fallthru
          _
        %s169 = sand.u32 %s28, 1
        %s170 = scalar_lea.sflag [#allocation3], %s169
        %s171 = sand.u32 %s28, 1
        %s172 = smul.addr %s171, 8
        %s173 = scalar_lea.vmem [#allocation2], %s172
        %p174 = pneg %p41
        %p175 = pneg %p38
        %p176 = pneg %p62
        %p177 = pneg %p59
        %p178 = pneg %p83
        %p179 = pneg %p80
        %p180 = pneg %p109
        %p181 = pneg %p106
        %s182 = sand.u32 %s96, 1
        %s183 = scalar_lea.sflag [#allocation4], %s182
        %s184 = sand.u32 %s96, 1
        %s185 = smul.addr %s184, 8
        %s186 = scalar_lea.vmem [#allocation5], %s185
        %v187 = vld [vmem:[%s164] sm:$0xff]
        %v189 = vcombine.high %v187, %v187
        %vm191 = vcmask 1043456
        %v192 = vsel %vm191, %v187, 0.0
        %v193 = vsel %vm191, %v189, 0.0
        %v194 = vadd.f32 %v192, %v193
        %195 = vadd.xlane.f32.xlu0 %v194
        %v196 = vpop.xlane.xlu0 %195
        %v197 = vrot.slane %v196, 4
        %v198 = vadd.f32 %v196, %v197
        %v199 = vrot.slane %v198, 2
        %v200 = vadd.f32 %v198, %v199
        %v201 = vrot.slane %v200, 1
        %v202 = vadd.f32 %v200, %v201
        %v203 = vrcp.pop 1024.0
        %v204 = vmul.f32 %v202, %v203
        %v205 = vlaneseq
        %v206 = vand.u32 %v205, 127
        %v207 = vadd.s32 %v206, 128
        %vm208 = vcmp.lt.s32.totalorder %v206, 256
        %vm209 = vcmp.lt.s32.totalorder %v207, 256
        %v210 = vsub.f32 %v187, %v204
        %v212 = vcombine.high %v210, %v210
        %v214 = vsel %vm208, %v210, 0.0
        %v215 = vsel %vm209, %v212, 0.0
        %v216 = vmul.f32 %v214, %v214
        %v217 = vmul.f32 %v215, %v215
        %v218 = vsel %vm191, %v216, 0.0
        %v219 = vsel %vm191, %v217, 0.0
        %v220 = vadd.f32 %v218, %v219
        %221 = vadd.xlane.f32.xlu0 %v220
        %v222 = vpop.xlane.xlu0 %221
        %v223 = vrot.slane %v222, 4
        %v224 = vadd.f32 %v222, %v223
        %v225 = vrot.slane %v224, 2
        %v226 = vadd.f32 %v224, %v225
        %v227 = vrot.slane %v226, 1
        %v228 = vadd.f32 %v226, %v227
        %v229 = vmul.f32 %v228, %v203
        %v230 = vadd.f32 %v229, 1e-08
        %v231 = vrsqrt.pop %v230
        %v232 = vld [vmem:[%s1] sm:$0xf]
        %v233 = vld [vmem:[%s2] sm:$0xf]
        %v234 = vmul.f32 %v232, %v231
        %v235 = vmul.f32 %v234, %v204
        %v236 = vsub.f32 %v233, %v235
        %238 = vset.pattern.permute.xlu0 0
        %239 = vperm.xlu0 %238, %v234
        %v240 = vpop.permute.xlu0 %239
        %v242 = vunpack.c.l.s4 839922192
        %v243 = vunpack.c.0.s8 %v242
        %v244 = vlaneseq
        %v245 = vshrl.u32 %v244, 7
        %v246 = vsub.s32 %v243, %v245
        %v247 = vrot.slane %v240, %v246
        %v249 = vmul.f32 %v187, %v247
        %251 = vset.pattern.permute.xlu0 0
        %252 = vperm.xlu0 %251, %v236
        %v253 = vpop.permute.xlu0 %252
        %v255 = vunpack.c.l.s4 839922192
        %v256 = vunpack.c.0.s8 %v255
        %v257 = vlaneseq
        %v258 = vshrl.u32 %v257, 7
        %v259 = vsub.s32 %v256, %v258
        %v260 = vrot.slane %v253, %v259
        %v262 = vadd.f32 %v249, %v260
        %263 = vst [vmem:[%s186] sm:$0xff] %v262
        %s264 = sand.u32 %s96, 1
        %s265 = scalar_lea.sflag [#allocation4], %s264
        %s266 = sand.u32 %s96, 1
        %s267 = smul.addr %s266, 8
        %s268 = scalar_lea.vmem [#allocation5], %s267
        // Predicated region
        $region37: #{tpu_custom_call.1} parent=31 // pred_check
          %p269 = pneg %p106
        $region38: #{tpu_custom_call.1} parent=31 // pred_check_branch
          %271 = sbr.rel (%p269) target = $region40
        $region39: #{tpu_custom_call.1} parent=31 // pred_region
          %s273 = ssub.s32 128, 128
          %274 = vsyncadd %s265, %s273
          %s275 = smul.addr %s20, 2
          %s276 = smul.addr %s275, 64
          %s277 = scalar_lea.hbm %s3, %s276
          %s279 = sshll.u32 %s268, 4
          %s280 = int_to_ptr.vmem [resolvable:$true] %s279
          %282 = dma.vmem_to_hbm [thread:$0]  %s280, 128, %s277, %s265
        $region40: #{tpu_custom_call.1} parent=31 // pred_fallthru
          _
      $region32: #{tpu_custom_call.1} parent=5 // pred_fallthru
        _
      %p283 = scmp.le.s32.totalorder 2, %s15
      // Predicated region
      $region41: #{tpu_custom_call.1} parent=5 // pred_check
        %p284 = pneg %p283
      $region42: #{tpu_custom_call.1} parent=5 // pred_check_branch
        %286 = sbr.rel (%p284) target = $region44
      $region43: #{tpu_custom_call.1} parent=5 // pred_region
        %s287 = ssub.s32 %s15, 2
        // Predicated region
        $region45: #{tpu_custom_call.1} parent=43 // pred_check
          %p288 = pneg %p112
        $region46: #{tpu_custom_call.1} parent=43 // pred_check_branch
          %290 = sbr.rel (%p288) target = $region48
        $region47: #{tpu_custom_call.1} parent=43 // pred_region
          %s291 = sand.u32 %s97, 1
          %s292 = scalar_lea.sflag [#allocation4], %s291
          %s293 = sand.u32 %s97, 1
          %s294 = smul.addr %s293, 8
          %s295 = scalar_lea.vmem [#allocation5], %s294
          %296 = dma.done %s292, 128
        $region48: #{tpu_custom_call.1} parent=43 // pred_fallthru
          _
      $region44: #{tpu_custom_call.1} parent=5 // pred_fallthru
        _
    $region6: #{tpu_custom_call.1} parent=1 // loop_footer
      %s19 = sadd.s32 1, %s15
    $region7: #{tpu_custom_call.1} parent=1 // loop_footer_branch
      %14 = sbr.rel target = $region3
    $region8: #{tpu_custom_call.1} parent=1 // loop_exit
      _
    %297 = vsyncpa [#allocation3], 1
    %s298 = scalar_lea.sflag [#allocation3], 1
    %299 = vsyncpa %s298, 1
    %300 = vsyncpa [#allocation4], 1
    %s301 = scalar_lea.sflag [#allocation4], 1
    %302 = vsyncpa %s301, 1

</llo_original>
